<compile_context>
chip_gen: v6e
topology: v6e:2x2x1
jax: 0.10.0
libtpu: 0.0.40
codegen_flags: <defaults>
</compile_context>

<pallas_src>
import functools
import math

import jax
import jax.numpy as jnp
from jax import lax
from jax.experimental import pallas as pl
from jax.experimental.pallas import tpu as pltpu

_LOG_2PI = math.log(2.0 * math.pi)


def _gaussian_nll_partial_kernel(pred_ref, tgt_ref, out_ref, *,
                                 eps, h_total, h_tile, batch):
    """One (full-W, Ht-row) slab -> lane-dense (1, 1, 128) partial loss sum.

    pred_ref: [B, 2, Ht, W]  (channel 0 = mu, channel 1 = raw sigma)
    tgt_ref : [B, Ht, W]
    out_ref : [1, 1, 128]    (partial loss sum in lane 0, zeros elsewhere)
    """
    mu = pred_ref[:, 0].astype(jnp.float32)      # [B, Ht, W], contiguous slab
    sraw = pred_ref[:, 1].astype(jnp.float32)    # [B, Ht, W]
    t = tgt_ref[...].astype(jnp.float32)         # [B, Ht, W]

    # sigma = softplus(raw) + eps.  Thresholded softplus (matches PyTorch's
    # F.softplus threshold=20): 2 EUP pushes (exp, log1p) instead of the
    # heavier logaddexp chain.
    sp = jnp.log1p(jnp.exp(jnp.minimum(sraw, 20.0)))
    sigma = jnp.where(sraw > 20.0, sraw, sp) + eps

    inv_sigma = pl.reciprocal(sigma, approx=True)     # EUP, cheap
    log_term = _LOG_2PI + jnp.log(sigma)              # log(2*pi*sigma)

    # PyTorch broadcast: targets[B,1,H,W] vs mu[B,H,W] -> [B,B,H,W] with
    #   loss[i,j] = 0.5*(log(2*pi*sigma_j) + (t_i - mu_j)^2 / sigma_j).
    # Closed form over the broadcast axis i (never materialize B^2), centered
    # by the per-location target mean m for f32 stability:
    #   sum_i (t_i - mu_j)^2 = sum_i (t_i - m)^2 + B*(mu_j - m)^2
    bf = float(batch)
    m = jnp.sum(t, axis=0, keepdims=True) * (1.0 / bf)    # [1, Ht, W]
    tc = t - m
    s2c = jnp.sum(tc * tc, axis=0, keepdims=True)         # [1, Ht, W]
    d = mu - m
    contrib = bf * log_term + (s2c + bf * (d * d)) * inv_sigma   # [B, Ht, W]

    # Mask ragged rows of the last H block (static no-op when Ht divides H).
    if h_total % h_tile:
        row = (pl.program_id(0) * h_tile
               + lax.broadcasted_iota(jnp.int32, contrib.shape, 1))
        contrib = jnp.where(row < h_total, contrib, 0.0)

    s = 0.5 * jnp.sum(contrib)                    # one tiny reduce per step
    lane = lax.broadcasted_iota(jnp.int32, (1, 1, 128), 2)
    out_ref[...] = jnp.where(lane == 0, s, 0.0)


def _choose_h_tile(B, H, W, itemsize):
    """Rows per grid step.

    Sized from TOTAL per-step HBM bytes (mu + raw-sigma + targets =
    3*B*Ht*W*itemsize) targeting ~2 MiB per step (amortizes the ~0.35us
    per-step overhead), sublane-aligned (multiple of 8), and split into >=2
    steps when there is enough work so the 'parallel' grid can occupy both
    v7x TensorCores.
    """
    row_bytes = 3 * B * W * itemsize
    target_bytes = 2 << 20
    ht = max(1, target_bytes // row_bytes)
    if ht >= H:
        # Whole image fits in one ~2 MiB step; split in two only if each half
        # still moves >= ~1 MiB.
        if row_bytes * H >= (2 << 20) and H >= 16:
            ht = max(8, (pl.cdiv(H, 2) // 8) * 8)
        else:
            return H
    else:
        ht = max(8, (ht // 8) * 8)
    return int(min(ht, H))


def gaussian_nll_loss(predictions, targets, *, eps=1e-6, reduction="mean",
                      h_tile=None):
    """predictions: [B, 2, H, W], targets: [B, H, W] -> scalar loss (f32)."""
    assert predictions.ndim == 4 and predictions.shape[1] == 2
    B, _, H, W = predictions.shape
    assert targets.shape == (B, H, W)

    itemsize = jnp.dtype(predictions.dtype).itemsize
    Ht = int(min(h_tile, H)) if h_tile is not None else _choose_h_tile(
        B, H, W, itemsize)
    num_tiles = pl.cdiv(H, Ht)

    # Double-buffered input blocks + headroom for f32 temporaries, clamped to
    # the v7x 64 MiB physical VMEM.
    in_block_bytes = 3 * B * Ht * W * itemsize
    vmem_limit = int(min(max(32 << 20,
                             2 * in_block_bytes + 12 * B * Ht * W * 4),
                         64 << 20))

    cost = pl.CostEstimate(
        flops=18 * B * H * W,
        transcendentals=4 * B * H * W,
        bytes_accessed=3 * B * H * W * itemsize + num_tiles * 128 * 4,
    )

    partials = pl.pallas_call(
        functools.partial(_gaussian_nll_partial_kernel,
                          eps=eps, h_total=H, h_tile=Ht, batch=B),
        out_shape=jax.ShapeDtypeStruct((num_tiles, 1, 128), jnp.float32),
        grid_spec=pltpu.PrefetchScalarGridSpec(
            num_scalar_prefetch=0,
            grid=(num_tiles,),
            in_specs=[
                pl.BlockSpec((B, 2, Ht, W), lambda i: (0, 0, i, 0)),
                pl.BlockSpec((B, Ht, W), lambda i: (0, i, 0)),
            ],
            out_specs=pl.BlockSpec((1, 1, 128), lambda i: (i, 0, 0)),
        ),
        compiler_params=pltpu.CompilerParams(
            # Independent per-tile partials -> grid axis shards across both
            # TensorCores on v7x; harmless on single-TC v5e/v6e.
            dimension_semantics=("parallel",),
            vmem_limit_bytes=vmem_limit,
        ),
        cost_estimate=cost,
    )(predictions, targets)

    loss_sum = jnp.sum(partials)      # tiny (num_tiles, 1, 128) final collapse

    n_elems = B * B * H * W           # broadcasted loss tensor is [B, B, H, W]
    if reduction == "mean":
        return loss_sum / n_elems
    if reduction == "sum":
        return loss_sum
    # TODO(synk): reduction='none' (elementwise [B,B,H,W] output) requires the
    # explicit broadcast tensor; only the 'mean'/'sum' hot paths are kernelized.
    raise NotImplementedError("reduction='none' not implemented in the kernel path")


def _gaussian_nll_loss_ref(predictions, targets, *, eps=1e-6, reduction="mean"):
    mu = predictions[:, 0, :, :].astype(jnp.float32)
    sigma = jax.nn.softplus(predictions[:, 1, :, :].astype(jnp.float32)) + eps
    t = targets.astype(jnp.float32)[:, None, :, :]
    loss = 0.5 * (jnp.log(2.0 * jnp.pi * sigma)[None, :, :, :]
                  + (t - mu[None, :, :, :]) ** 2 / sigma[None, :, :, :])
    if reduction == "mean":
        return jnp.mean(loss)
    return jnp.sum(loss)


if __name__ == "__main__":
    key = jax.random.PRNGKey(0)
    k1, k2, k3, k4 = jax.random.split(key, 4)

    # Shapes implied by the module: predictions [B, 2, H, W], targets [B, H, W].
    B, H, W = 2, 16, 16
    predictions = jax.random.normal(k1, (B, 2, H, W), dtype=jnp.float32)
    targets = jax.random.normal(k2, (B, H, W), dtype=jnp.float32)

    out = gaussian_nll_loss(predictions, targets, eps=1e-6, reduction="mean")
    out = jax.block_until_ready(out)
    ref = _gaussian_nll_loss_ref(predictions, targets, eps=1e-6, reduction="mean")
    assert jnp.allclose(out, ref, rtol=2e-3, atol=1e-4), (out, ref)

    # Second config: non-128 lane width, multi-tile grid with a ragged last
    # H block (exercises the in-kernel row mask), 'sum' reduction.
    B2, H2, W2 = 3, 20, 40
    p2 = jax.random.normal(k3, (B2, 2, H2, W2), dtype=jnp.float32)
    t2 = jax.random.normal(k4, (B2, H2, W2), dtype=jnp.float32)
    out2 = gaussian_nll_loss(p2, t2, eps=1e-6, reduction="sum", h_tile=8)
    out2 = jax.block_until_ready(out2)
    ref2 = _gaussian_nll_loss_ref(p2, t2, eps=1e-6, reduction="sum")
    assert jnp.allclose(out2, ref2, rtol=2e-3, atol=1e-1), (out2, ref2)

    print("KERNEL_OK")
</pallas_src>

<mosaic_0001>
module attributes {stable_mosaic.version = 11 : i64} {
  func.func @_gaussian_nll_partial_kernel(%arg0: i32, %arg1: memref<2x2x16x16xf32, #tpu.memory_space<vmem>>, %arg2: memref<2x16x16xf32, #tpu.memory_space<vmem>>, %arg3: memref<1x1x128xf32, #tpu.memory_space<vmem>>) attributes {dimension_semantics = [#tpu.dimension_semantics<parallel>], iteration_bounds = array<i64: 1>, scalar_prefetch = 0 : i64, scratch_operands = 0 : i64, tpu.core_type = #tpu.core_type<tc>, window_params = [{transform_indices = @transform_0, window_bounds = array<i64: 2, 2, 16, 16>}, {transform_indices = @transform_1, window_bounds = array<i64: 2, 16, 16>}, {transform_indices = @transform_2, window_bounds = array<i64: 1, 1, 128>}]} {
    %c0 = arith.constant 0 : index
    %c0_0 = arith.constant 0 : index
    %c0_1 = arith.constant 0 : index
    %c0_2 = arith.constant 0 : index
    %0 = vector.load %arg1[%c0, %c0_0, %c0_1, %c0_2] : memref<2x2x16x16xf32, #tpu.memory_space<vmem>>, vector<2x1x16x16xf32>
    %1 = vector.shape_cast %0 : vector<2x1x16x16xf32> to vector<2x16x16xf32>
    %c0_3 = arith.constant 0 : index
    %c1 = arith.constant 1 : index
    %c0_4 = arith.constant 0 : index
    %c0_5 = arith.constant 0 : index
    %2 = vector.load %arg1[%c0_3, %c1, %c0_4, %c0_5] : memref<2x2x16x16xf32, #tpu.memory_space<vmem>>, vector<2x1x16x16xf32>
    %3 = vector.shape_cast %2 : vector<2x1x16x16xf32> to vector<2x16x16xf32>
    %c0_6 = arith.constant 0 : index
    %c0_7 = arith.constant 0 : index
    %c0_8 = arith.constant 0 : index
    %4 = vector.load %arg2[%c0_6, %c0_7, %c0_8] : memref<2x16x16xf32, #tpu.memory_space<vmem>>, vector<2x16x16xf32>
    %cst = arith.constant 2.000000e+01 : f32
    %5 = vector.broadcast %cst : f32 to vector<2x16x16xf32>
    %6 = arith.minimumf %3, %5 : vector<2x16x16xf32>
    %7 = math.exp %6 : vector<2x16x16xf32>
    %8 = math.log1p %7 : vector<2x16x16xf32>
    %cst_9 = arith.constant 2.000000e+01 : f32
    %9 = vector.broadcast %cst_9 : f32 to vector<2x16x16xf32>
    %10 = arith.cmpf ogt, %3, %9 : vector<2x16x16xf32>
    %11 = arith.select %10, %3, %8 : vector<2x16x16xi1>, vector<2x16x16xf32>
    %cst_10 = arith.constant 9.99999997E-7 : f32
    %12 = vector.broadcast %cst_10 : f32 to vector<2x16x16xf32>
    %13 = arith.addf %11, %12 : vector<2x16x16xf32>
    %14 = tpu.reciprocal %13 {approx = true} : vector<2x16x16xf32> -> vector<2x16x16xf32>
    %15 = math.log %13 : vector<2x16x16xf32>
    %cst_11 = arith.constant 1.83787704 : f32
    %16 = vector.broadcast %cst_11 : f32 to vector<2x16x16xf32>
    %17 = arith.addf %16, %15 : vector<2x16x16xf32>
    %cst_12 = arith.constant dense<0.000000e+00> : vector<16x16xf32>
    %18 = vector.multi_reduction <add>, %4, %cst_12 [0] : vector<2x16x16xf32> to vector<16x16xf32>
    %19 = vector.shape_cast %18 : vector<16x16xf32> to vector<1x16x16xf32>
    %cst_13 = arith.constant 5.000000e-01 : f32
    %20 = vector.broadcast %cst_13 : f32 to vector<1x16x16xf32>
    %21 = arith.mulf %19, %20 : vector<1x16x16xf32>
    %22 = vector.broadcast %21 : vector<1x16x16xf32> to vector<2x16x16xf32>
    %23 = arith.subf %4, %22 : vector<2x16x16xf32>
    %24 = arith.mulf %23, %23 : vector<2x16x16xf32>
    %cst_14 = arith.constant dense<0.000000e+00> : vector<16x16xf32>
    %25 = vector.multi_reduction <add>, %24, %cst_14 [0] : vector<2x16x16xf32> to vector<16x16xf32>
    %26 = vector.shape_cast %25 : vector<16x16xf32> to vector<1x16x16xf32>
    %27 = vector.broadcast %21 : vector<1x16x16xf32> to vector<2x16x16xf32>
    %28 = arith.subf %1, %27 : vector<2x16x16xf32>
    %cst_15 = arith.constant 2.000000e+00 : f32
    %29 = vector.broadcast %cst_15 : f32 to vector<2x16x16xf32>
    %30 = arith.mulf %29, %17 : vector<2x16x16xf32>
    %31 = arith.mulf %28, %28 : vector<2x16x16xf32>
    %cst_16 = arith.constant 2.000000e+00 : f32
    %32 = vector.broadcast %cst_16 : f32 to vector<2x16x16xf32>
    %33 = arith.mulf %32, %31 : vector<2x16x16xf32>
    %34 = vector.broadcast %26 : vector<1x16x16xf32> to vector<2x16x16xf32>
    %35 = arith.addf %34, %33 : vector<2x16x16xf32>
    %36 = arith.mulf %35, %14 : vector<2x16x16xf32>
    %37 = arith.addf %30, %36 : vector<2x16x16xf32>
    %38 = vector.shape_cast %37 : vector<2x16x16xf32> to vector<1x2x16x16xf32>
    %cst_17 = arith.constant dense<0.000000e+00> : vector<1xf32>
    %39 = vector.multi_reduction <add>, %38, %cst_17 [1, 2, 3] : vector<1x2x16x16xf32> to vector<1xf32>
    %40 = vector.shape_cast %39 : vector<1xf32> to vector<1x1x1x1xf32>
    %41 = vector.extract %40[0, 0, 0, 0] : f32 from vector<1x1x1x1xf32>
    %cst_18 = arith.constant 5.000000e-01 : f32
    %42 = arith.mulf %cst_18, %41 : f32
    %43 = tpu.iota {dimensions = array<i32: 2>} : vector<1x1x128xi32>
    %c0_i32 = arith.constant 0 : i32
    %44 = vector.broadcast %c0_i32 : i32 to vector<1x1x128xi32>
    %45 = arith.cmpi eq, %43, %44 : vector<1x1x128xi32>
    %cst_19 = arith.constant 0.000000e+00 : f32
    %46 = vector.broadcast %42 : f32 to vector<1x1x128xf32>
    %47 = vector.broadcast %cst_19 : f32 to vector<1x1x128xf32>
    %48 = arith.select %45, %46, %47 : vector<1x1x128xi1>, vector<1x1x128xf32>
    %c0_20 = arith.constant 0 : index
    %c0_21 = arith.constant 0 : index
    %c0_22 = arith.constant 0 : index
    %49 = vector.load %arg3[%c0_20, %c0_21, %c0_22] : memref<1x1x128xf32, #tpu.memory_space<vmem>>, vector<1x1x128xf32>
    tpu.vector_store %arg3[%c0_20, %c0_21, %c0_22], %48 {strides = array<i32>} : memref<1x1x128xf32, #tpu.memory_space<vmem>>, vector<1x1x128xf32>,
    return
  }
  func.func @transform_0(%arg0: i32) -> (i32, i32, i32, i32) {
    %c0_i32 = arith.constant 0 : i32
    %c0_i32_0 = arith.constant 0 : i32
    %c0_i32_1 = arith.constant 0 : i32
    %c0_i32_2 = arith.constant 0 : i32
    return %c0_i32, %c0_i32_0, %arg0, %c0_i32_1 : i32, i32, i32, i32
  }
  func.func @transform_1(%arg0: i32) -> (i32, i32, i32) {
    %c0_i32 = arith.constant 0 : i32
    %c0_i32_0 = arith.constant 0 : i32
    %c0_i32_1 = arith.constant 0 : i32
    return %c0_i32, %arg0, %c0_i32_0 : i32, i32, i32
  }
  func.func @transform_2(%arg0: i32) -> (i32, i32, i32) {
    %c0_i32 = arith.constant 0 : i32
    %c0_i32_0 = arith.constant 0 : i32
    %c0_i32_1 = arith.constant 0 : i32
    return %arg0, %c0_i32, %c0_i32_0 : i32, i32, i32
  }
}

</mosaic_0001>

<llo_original>
// kernel: tpu_custom_call.1
$region0: #{tpu_custom_call.1}
  #allocation0 [shape = 'u32[]', space=smem, size = 0x4, offset = 0x4, fixed_abs, tag = 'smem constant byte address 0x4 - core index']
  #allocation1 [shape = 'u32[144,128]{1,0:T(1,128)}', space=vmem, size = 0x12000, scoped, tag = 'internal scratch']
  %s0 = inlined_call_operand.hbm [shape: f32[2,2,16,16], index: 0, kind: input, shape index: {}]
  %s1 = inlined_call_operand.hbm [shape: f32[2,16,16], index: 1, kind: input, shape index: {}]
  %s2 = inlined_call_operand.hbm [shape: f32[1,1,128], index: 2, kind: output, shape index: {}]
  %s3 = sld [smem:[#allocation0]]
  $region26: #{tpu_custom_call.1} parent=0
    _
  %s5 = ssub.s32 1, %s3
  %s6 = scalar_select 0, %s5, %s3
  $region1: #{tpu_custom_call.1} parent=0
    #allocation2 [shape = 'u8[32768]{0}', space=vmem, size = 0x8000, scoped, tag = 'input window, operand 0, single buffered']
    #allocation3 [shape = 's32[1]{0}', space=sflag, size = 0x4, scoped, tag = 'scoped memory for tpu_custom_call.1']
    #allocation4 [shape = 's32[1]{0}', space=sflag, size = 0x4, scoped, tag = 'scoped memory for tpu_custom_call.1']
    #allocation5 [shape = 'u8[16384]{0}', space=vmem, size = 0x4000, scoped, tag = 'input window, operand 1, single buffered']
    #allocation6 [shape = 's32[1]{0}', space=sflag, size = 0x4, scoped, tag = 'scoped memory for tpu_custom_call.1']
    #allocation7 [shape = 'u8[512]{0}', space=vmem, size = 0x400, scoped, tag = 'output window, operand 0, single buffered']
    %7 = vsyncpa [#allocation3], 0
    %8 = vsyncpa [#allocation6], 0
    %9 = vsyncpa [#allocation4], 0
    // Predicated region
    $region2: #{tpu_custom_call.1} parent=1 // pred_check
      _
    $region3: #{tpu_custom_call.1} parent=1 // pred_check_branch
      %11 = sbr.rel (0) target = $region5
    $region4: #{tpu_custom_call.1} parent=1 // pred_region
      %s13 = ssub.s32 1024, 1024
      %14 = vsyncadd [#allocation3], %s13
      %s15 = sshll.u32 [#allocation2], 4
      %s16 = int_to_ptr.vmem [resolvable:$true] %s15
      %21 = dma.hbm_to_vmem [thread:$0]  %s0, 1024, %s16, [#allocation3], 128, 128, 8
    $region5: #{tpu_custom_call.1} parent=1 // pred_fallthru
      _
    // Predicated region
    $region6: #{tpu_custom_call.1} parent=1 // pred_check
      _
    $region7: #{tpu_custom_call.1} parent=1 // pred_check_branch
      %23 = sbr.rel (0) target = $region9
    $region8: #{tpu_custom_call.1} parent=1 // pred_region
      %s25 = ssub.s32 512, 512
      %26 = vsyncadd [#allocation6], %s25
      %s27 = sshll.u32 [#allocation5], 4
      %s28 = int_to_ptr.vmem [resolvable:$true] %s27
      %33 = dma.hbm_to_vmem [thread:$0]  %s1, 512, %s28, [#allocation6], 128, 128, 8
    $region9: #{tpu_custom_call.1} parent=1 // pred_fallthru
      _
    // Predicated region
    $region10: #{tpu_custom_call.1} parent=1 // pred_check
      _
    $region11: #{tpu_custom_call.1} parent=1 // pred_check_branch
      %35 = sbr.rel (0) target = $region13
    $region12: #{tpu_custom_call.1} parent=1 // pred_region
      %36 = dma.done [#allocation3], 1024
    $region13: #{tpu_custom_call.1} parent=1 // pred_fallthru
      _
    // Predicated region
    $region14: #{tpu_custom_call.1} parent=1 // pred_check
      _
    $region15: #{tpu_custom_call.1} parent=1 // pred_check_branch
      %38 = sbr.rel (0) target = $region17
    $region16: #{tpu_custom_call.1} parent=1 // pred_region
      %39 = dma.done [#allocation6], 512
    $region17: #{tpu_custom_call.1} parent=1 // pred_fallthru
      _
    %v40 = vld [vmem:[#allocation2] sm:$0xff]
    %v41 = vld [vmem:[#allocation2 + $0x8] sm:$0xff]
    %v42 = vld [vmem:[#allocation2 + $0x20] sm:$0xff]
    %v43 = vld [vmem:[#allocation2 + $0x28] sm:$0xff]
    %s44 = scalar_lea.vmem [#allocation2], 16
    %v45 = vld [vmem:[%s44] sm:$0xff]
    %v46 = vld [vmem:[%s44 + $0x8] sm:$0xff]
    %v47 = vld [vmem:[%s44 + $0x20] sm:$0xff]
    %v48 = vld [vmem:[%s44 + $0x28] sm:$0xff]
    %v49 = vld [vmem:[#allocation5] sm:$0xff]
    %v50 = vld [vmem:[#allocation5 + $0x8] sm:$0xff]
    %v51 = vld [vmem:[#allocation5 + $0x10] sm:$0xff]
    %v52 = vld [vmem:[#allocation5 + $0x18] sm:$0xff]
    %v53 = vmin.f32 %v45, 20.0
    %v54 = vmin.f32 %v46, 20.0
    %v55 = vmin.f32 %v47, 20.0
    %v56 = vmin.f32 %v48, 20.0
    %v57 = vmul.f32 %v53, 1.442695
    %v58 = vpow.pop %v57
    %v59 = vmul.f32 %v54, 1.442695
    %v60 = vpow.pop %v59
    %v61 = vmul.f32 %v55, 1.442695
    %v62 = vpow.pop %v61
    %v63 = vmul.f32 %v56, 1.442695
    %v64 = vpow.pop %v63
    %v65 = vadd.f32 %v58, 1.0
    %v66 = vlog2.pop %v65
    %v67 = vmul.f32 %v66, 0.6931472
    %v68 = vmul.f32 -0.5, %v58
    %v69 = vadd.f32 %v68, 1.0
    %v70 = vmul.f32 %v69, %v58
    %v71 = vand.u32 2147483647, %v58
    %vm72 = vcmp.lt.f32.partialorder %v71, 0.0004427343
    %v73 = vsel %vm72, %v70, %v67
    %v74 = vadd.f32 %v60, 1.0
    %v75 = vlog2.pop %v74
    %v76 = vmul.f32 %v75, 0.6931472
    %v77 = vmul.f32 -0.5, %v60
    %v78 = vadd.f32 %v77, 1.0
    %v79 = vmul.f32 %v78, %v60
    %v80 = vand.u32 2147483647, %v60
    %vm81 = vcmp.lt.f32.partialorder %v80, 0.0004427343
    %v82 = vsel %vm81, %v79, %v76
    %v83 = vadd.f32 %v62, 1.0
    %v84 = vlog2.pop %v83
    %v85 = vmul.f32 %v84, 0.6931472
    %v86 = vmul.f32 -0.5, %v62
    %v87 = vadd.f32 %v86, 1.0
    %v88 = vmul.f32 %v87, %v62
    %v89 = vand.u32 2147483647, %v62
    %vm90 = vcmp.lt.f32.partialorder %v89, 0.0004427343
    %v91 = vsel %vm90, %v88, %v85
    %v92 = vadd.f32 %v64, 1.0
    %v93 = vlog2.pop %v92
    %v94 = vmul.f32 %v93, 0.6931472
    %v95 = vmul.f32 -0.5, %v64
    %v96 = vadd.f32 %v95, 1.0
    %v97 = vmul.f32 %v96, %v64
    %v98 = vand.u32 2147483647, %v64
    %vm99 = vcmp.lt.f32.partialorder %v98, 0.0004427343
    %v100 = vsel %vm99, %v97, %v94
    %vm101 = vcmp.gt.f32.partialorder %v45, 20.0
    %vm102 = vcmp.gt.f32.partialorder %v46, 20.0
    %vm103 = vcmp.gt.f32.partialorder %v47, 20.0
    %vm104 = vcmp.gt.f32.partialorder %v48, 20.0
    %v105 = vsel %vm101, %v45, %v73
    %v106 = vsel %vm102, %v46, %v82
    %v107 = vsel %vm103, %v47, %v91
    %v108 = vsel %vm104, %v48, %v100
    %v109 = vadd.f32 %v105, 1e-06
    %v110 = vadd.f32 %v106, 1e-06
    %v111 = vadd.f32 %v107, 1e-06
    %v112 = vadd.f32 %v108, 1e-06
    %v113 = vrcp.pop %v109
    %v114 = vrcp.pop %v110
    %v115 = vrcp.pop %v111
    %v116 = vrcp.pop %v112
    %v117 = vlog2.pop %v109
    %v118 = vmul.f32 %v117, 0.6931472
    %v119 = vlog2.pop %v110
    %v120 = vmul.f32 %v119, 0.6931472
    %v121 = vlog2.pop %v111
    %v122 = vmul.f32 %v121, 0.6931472
    %v123 = vlog2.pop %v112
    %v124 = vmul.f32 %v123, 0.6931472
    %v125 = vadd.f32 %v118, 1.837877
    %v126 = vadd.f32 %v120, 1.837877
    %v127 = vadd.f32 %v122, 1.837877
    %v128 = vadd.f32 %v124, 1.837877
    %vm129 = vcmask 130048
    %v130 = vsel %vm129, %v49, 0.0
    %v131 = vsel %vm129, %v51, 0.0
    %v132 = vadd.f32 %v130, %v131
    %v133 = vsel %vm129, %v50, 0.0
    %v134 = vsel %vm129, %v52, 0.0
    %v135 = vadd.f32 %v133, %v134
    %v136 = vmul.f32 %v132, 0.5
    %v137 = vmul.f32 %v135, 0.5
    %v138 = vsub.f32 %v49, %v136
    %v139 = vsub.f32 %v50, %v137
    %v140 = vsub.f32 %v51, %v136
    %v141 = vsub.f32 %v52, %v137
    %v142 = vmul.f32 %v138, %v138
    %v143 = vmul.f32 %v139, %v139
    %v144 = vmul.f32 %v140, %v140
    %v145 = vmul.f32 %v141, %v141
    %v146 = vsel %vm129, %v142, 0.0
    %v147 = vsel %vm129, %v144, 0.0
    %v148 = vadd.f32 %v146, %v147
    %v149 = vsel %vm129, %v143, 0.0
    %v150 = vsel %vm129, %v145, 0.0
    %v151 = vadd.f32 %v149, %v150
    %v152 = vsub.f32 %v40, %v136
    %v153 = vsub.f32 %v41, %v137
    %v154 = vsub.f32 %v42, %v136
    %v155 = vsub.f32 %v43, %v137
    %v156 = vmul.f32 %v125, 2.0
    %v157 = vmul.f32 %v126, 2.0
    %v158 = vmul.f32 %v127, 2.0
    %v159 = vmul.f32 %v128, 2.0
    %v160 = vmul.f32 %v152, %v152
    %v161 = vmul.f32 %v153, %v153
    %v162 = vmul.f32 %v154, %v154
    %v163 = vmul.f32 %v155, %v155
    %v164 = vmul.f32 %v160, 2.0
    %v165 = vmul.f32 %v161, 2.0
    %v166 = vmul.f32 %v162, 2.0
    %v167 = vmul.f32 %v163, 2.0
    %v168 = vadd.f32 %v148, %v164
    %v169 = vadd.f32 %v151, %v165
    %v170 = vadd.f32 %v148, %v166
    %v171 = vadd.f32 %v151, %v167
    %v172 = vmul.f32 %v168, %v113
    %v173 = vmul.f32 %v169, %v114
    %v174 = vmul.f32 %v170, %v115
    %v175 = vmul.f32 %v171, %v116
    %v176 = vadd.f32 %v156, %v172
    %v177 = vadd.f32 %v157, %v173
    %v178 = vadd.f32 %v158, %v174
    %v179 = vadd.f32 %v159, %v175
    %v180 = vsel %vm129, %v176, 0.0
    %v181 = vsel %vm129, %v177, 0.0
    %v182 = vadd.f32 %v180, %v181
    %v183 = vsel %vm129, %v178, 0.0
    %v184 = vadd.f32 %v182, %v183
    %v185 = vsel %vm129, %v179, 0.0
    %v186 = vadd.f32 %v184, %v185
    %187 = vadd.xlane.f32.xlu0 %v186
    %v188 = vpop.xlane.xlu0 %187
    %v189 = vrot.slane %v188, 4
    %v190 = vadd.f32 %v188, %v189
    %v191 = vrot.slane %v190, 2
    %v192 = vadd.f32 %v190, %v191
    %v193 = vrot.slane %v192, 1
    %v194 = vadd.f32 %v192, %v193
    %s195 = vtos %v194
    %s196 = smul.f32 %s195, 0.5
    %v197 = vlaneseq
    %v198 = vand.u32 %v197, 127
    %vm199 = vcmp.eq.s32.totalorder %v198, 0
    %v200 = vstv %s196
    %v201 = vsel %vm199, %v200, 0.0
    %202 = vst [vmem:[#allocation7] sm:$0x1] %v201
    // Predicated region
    $region18: #{tpu_custom_call.1} parent=1 // pred_check
      _
    $region19: #{tpu_custom_call.1} parent=1 // pred_check_branch
      %204 = sbr.rel (0) target = $region21
    $region20: #{tpu_custom_call.1} parent=1 // pred_region
      %s206 = ssub.s32 16, 16
      %207 = vsyncadd [#allocation4], %s206
      %s209 = sshll.u32 [#allocation7], 4
      %s210 = int_to_ptr.vmem [resolvable:$true] %s209
      %212 = dma.vmem_to_hbm [thread:$0]  %s210, 16, %s2, [#allocation4]
    $region21: #{tpu_custom_call.1} parent=1 // pred_fallthru
      _
    // Predicated region
    $region22: #{tpu_custom_call.1} parent=1 // pred_check
      _
    $region23: #{tpu_custom_call.1} parent=1 // pred_check_branch
      %214 = sbr.rel (0) target = $region25
    $region24: #{tpu_custom_call.1} parent=1 // pred_region
      %215 = dma.done [#allocation4], 16
    $region25: #{tpu_custom_call.1} parent=1 // pred_fallthru
      _
    %216 = vsyncpa [#allocation3], 1
    %217 = vsyncpa [#allocation6], 1
    %218 = vsyncpa [#allocation4], 1

</llo_original>
